<compile_context>
chip_gen: v7x
topology: tpu7x:2x2x1
jax: 0.10.0
libtpu: 0.0.40
codegen_flags: <defaults>
</compile_context>

<pallas_src>
import jax
import jax.numpy as jnp
from jax.experimental import pallas as pl
from jax.experimental.pallas import tpu as pltpu


# ----------------------------- kernel ---------------------------------------

def ensemble_kernel(x_ref, wAB_ref, bAB_ref, wC_ref, bC_ref, o_ref):
    # In-kernel cast: x arrives in its native dtype (e.g. f32); the cast is
    # free VPU work hidden under the MXU/DMA and avoids an extra HBM pass.
    x = x_ref[...].astype(wAB_ref.dtype)                              # (TB, Din) bf16

    # Fused modelA|modelB linear -> (TB, 2F), f32 MXU accumulation.
    x12 = jnp.dot(x, wAB_ref[...], preferred_element_type=jnp.float32) + bAB_ref[...]

    # relu + packed classifier (cat([x1,x2,x2]) folded on the host).
    h = jnp.maximum(x12, 0.0).astype(wC_ref.dtype)                    # bf16 for MXU
    out = jnp.dot(h, wC_ref[...], preferred_element_type=jnp.float32) + bC_ref[...]

    o_ref[...] = out.astype(o_ref.dtype)                              # bf16 store (lane-dense)


# ------------------------ one-time weight packing ----------------------------

def pack_ensemble_params(wA, bA, wB, bB, wC, bC, *, compute_dtype=jnp.bfloat16):
    """One-time host-side fusion/packing of the PyTorch parameters.

    Call once and reuse the result for every forward pass so the per-call graph
    contains no concat/add/cast HLO. Accepts 1-D (F,) or (1, F) biases.
    Weights are expected as (in_features, out_features) (i.e. PyTorch W.T).
    Returns (wAB, bAB, wC_packed, bC_row).
    """
    F = wA.shape[1]
    bA = jnp.reshape(bA, (1, -1))
    bB = jnp.reshape(bB, (1, -1))
    bC = jnp.reshape(bC, (1, -1))

    wAB = jnp.concatenate([wA, wB], axis=1).astype(compute_dtype)          # (Din, 2F)
    bAB = jnp.concatenate([bA, bB], axis=1).astype(jnp.float32)            # (1, 2F)
    # relu(cat(x1,x2,x2)) @ wC == relu(x1)@wC[:F] + relu(x2)@(wC[F:2F]+wC[2F:])
    wC_packed = jnp.concatenate([wC[:F], wC[F:2 * F] + wC[2 * F:]],
                                axis=0).astype(compute_dtype)              # (2F, F)
    return wAB, bAB, wC_packed, bC.astype(jnp.float32)


# ----------------------------- tiling helpers --------------------------------

def _tpu_vmem_capacity_bytes():
    try:
        return int(pltpu.get_tpu_info().vmem_capacity_bytes)
    except Exception:
        return 128 * 1024 * 1024                                           # v5e/v6e default


def _is_v7x():
    try:
        return "v7" in jax.devices()[0].device_kind.lower()
    except Exception:
        return False


def _pick_tile_b(B, per_row_bytes, resident_bytes, vmem_budget, *,
                 min_steps, prefer_even_steps):
    """Largest batch tile that fits the VMEM budget and divides B.

    min_steps=2 on v7x (keep both TensorCores busy), 1 otherwise (don't pay an
    extra ~0.35us grid step on single-TC chips for small batches).
    """
    cap = max(8, (vmem_budget - resident_bytes) // max(per_row_bytes, 1))
    candidates = [B] + [d for d in (8192, 4096, 2048, 1024, 512, 256, 128, 64, 32, 16, 8)
                        if d < B and B % d == 0]
    valid = [t for t in candidates if t <= cap] or [min(candidates)]
    multi = [t for t in valid if B // t >= min_steps]
    pool = multi or valid
    if prefer_even_steps:
        even = [t for t in pool if (B // t) % 2 == 0]
        pool = even or pool
    return max(pool)


# ----------------------------- forward ---------------------------------------

def ensemble_forward_packed(x, wAB, bAB, wC_packed, bC, *, tile_b=None,
                            out_dtype=jnp.bfloat16):
    """Forward pass with pre-packed weights (use pack_ensemble_params once)."""
    B, Din = x.shape
    F2 = wAB.shape[1]
    F = wC_packed.shape[1]
    assert F2 == 2 * F, "packed weight shape mismatch"

    x_itemsize = jnp.dtype(x.dtype).itemsize
    w_itemsize = jnp.dtype(wAB.dtype).itemsize
    out_itemsize = jnp.dtype(out_dtype).itemsize

    # --- generation-aware VMEM budget (~56 MiB on v7x, ~112 MiB on v5e/v6e) ---
    vmem_cap = _tpu_vmem_capacity_bytes()
    vmem_budget = (vmem_cap * 7) // 8

    # Constant-index weight/bias specs are still double-buffered by Pallas: 2x.
    resident_bytes = 2 * (Din * F2 * w_itemsize            # wAB
                          + F2 * F * w_itemsize            # packed classifier
                          + 8 * F2 * 4 + 8 * F * 4)        # padded (8, lanes) bias tiles
    # Double-buffered per-row streaming bytes: x tile (native dtype) + out tile.
    per_row_bytes = 2 * Din * x_itemsize + 2 * F * out_itemsize

    is_v7 = _is_v7x()
    if tile_b is None:
        tile_b = _pick_tile_b(B, per_row_bytes, resident_bytes, vmem_budget,
                              min_steps=2 if is_v7 else 1,
                              prefer_even_steps=is_v7)
    assert B % tile_b == 0, "batch must be divisible by tile_b"
    grid = (B // tile_b,)

    vmem_need = resident_bytes + tile_b * per_row_bytes
    vmem_limit = int(min(vmem_budget, max(2 * vmem_need, 16 * 1024 * 1024)))

    cost = pl.CostEstimate(
        flops=2 * B * Din * F2 + 2 * B * F2 * F,
        transcendentals=0,
        bytes_accessed=(B * Din * x_itemsize            # x read (single pass)
                        + Din * F2 * w_itemsize         # wAB
                        + F2 * 4                        # bAB
                        + F2 * F * w_itemsize           # packed classifier
                        + F * 4                         # bC
                        + B * F * out_itemsize),        # output writeback
    )

    return pl.pallas_call(
        ensemble_kernel,
        out_shape=jax.ShapeDtypeStruct((B, F), out_dtype),
        grid=grid,
        in_specs=[
            pl.BlockSpec((tile_b, Din), lambda i: (i, 0)),   # x: tiled over batch
            pl.BlockSpec((Din, F2),     lambda i: (0, 0)),   # wAB (resident)
            pl.BlockSpec((1, F2),       lambda i: (0, 0)),   # bAB (resident)
            pl.BlockSpec((F2, F),       lambda i: (0, 0)),   # packed classifier W
            pl.BlockSpec((1, F),        lambda i: (0, 0)),   # bC
        ],
        out_specs=pl.BlockSpec((tile_b, F), lambda i: (i, 0)),
        compiler_params=pltpu.CompilerParams(
            dimension_semantics=("parallel",),
            vmem_limit_bytes=vmem_limit,
        ),
        cost_estimate=cost,
    )(x, wAB, bAB, wC_packed, bC)


def ensemble_forward(x, wA, bA, wB, bB, wC, bC, *, tile_b=None,
                     compute_dtype=jnp.bfloat16, out_dtype=jnp.bfloat16):
    """Convenience wrapper: packs weights then runs the kernel. For repeated
    calls, pack once with pack_ensemble_params and use ensemble_forward_packed."""
    packed = pack_ensemble_params(wA, bA, wB, bB, wC, bC, compute_dtype=compute_dtype)
    return ensemble_forward_packed(x, *packed, tile_b=tile_b, out_dtype=out_dtype)


# ----------------------------- reference -------------------------------------

def reference_forward(x, wA, bA, wB, bB, wC, bC, *, compute_dtype=jnp.bfloat16):
    """Direct (un-fused) translation of the PyTorch forward, mirroring the
    kernel's bf16-compute / f32-accumulate precision."""
    xc = x.astype(compute_dtype)
    x1 = jnp.dot(xc, wA.astype(compute_dtype),
                 preferred_element_type=jnp.float32) + jnp.reshape(bA, (1, -1))
    x2 = jnp.dot(xc, wB.astype(compute_dtype),
                 preferred_element_type=jnp.float32) + jnp.reshape(bB, (1, -1))
    cat = jnp.concatenate([x1, x2, x2], axis=-1)
    h = jnp.maximum(cat, 0.0).astype(compute_dtype)
    return jnp.dot(h, wC.astype(compute_dtype),
                   preferred_element_type=jnp.float32) + jnp.reshape(bC, (1, -1))


if __name__ == "__main__":
    # Small, TPU-friendly shapes: features are a multiple of 128 (lane-dense,
    # unmasked bf16 output stores).
    B = 256
    D_IN = 128
    NUM_FEATURES = 128

    key = jax.random.PRNGKey(0)
    kx, kA, kB, kC, kbA, kbB, kbC = jax.random.split(key, 7)

    x = jax.random.normal(kx, (B, D_IN), dtype=jnp.float32)

    # PyTorch Linear stores (out, in); we keep the kernel-friendly (in, out).
    # Biases are PyTorch-style 1-D (F,) — packing handles the reshape.
    wA = jax.random.normal(kA, (D_IN, NUM_FEATURES), dtype=jnp.float32) * 0.1
    bA = jax.random.normal(kbA, (NUM_FEATURES,), dtype=jnp.float32) * 0.1
    wB = jax.random.normal(kB, (D_IN, NUM_FEATURES), dtype=jnp.float32) * 0.1
    bB = jax.random.normal(kbB, (NUM_FEATURES,), dtype=jnp.float32) * 0.1
    wC = jax.random.normal(kC, (3 * NUM_FEATURES, NUM_FEATURES), dtype=jnp.float32) * 0.1
    bC = jax.random.normal(kbC, (NUM_FEATURES,), dtype=jnp.float32) * 0.1

    # One-time weight packing, hoisted out of the per-call path.
    packed = pack_ensemble_params(wA, bA, wB, bB, wC, bC)

    out = ensemble_forward_packed(x, *packed)
    out = jax.block_until_ready(out)

    ref = reference_forward(x, wA, bA, wB, bB, wC, bC)
    assert out.shape == (B, NUM_FEATURES)
    # bf16 output + bf16 MXU compute + algebraic packing (f32 pre-add of
    # wC2+wC3 before the bf16 cast) -> small accumulation/rounding differences.
    assert jnp.allclose(out.astype(jnp.float32), ref, atol=4e-2, rtol=4e-2), \
        "mismatch vs reference"

    print("KERNEL_OK")
</pallas_src>

<mosaic_0001>
module attributes {stable_mosaic.version = 11 : i64} {
  func.func @ensemble_kernel(%arg0: i32, %arg1: memref<256x128xf32, #tpu.memory_space<vmem>>, %arg2: memref<128x256xbf16, #tpu.memory_space<vmem>>, %arg3: memref<1x256xf32, #tpu.memory_space<vmem>>, %arg4: memref<256x128xbf16, #tpu.memory_space<vmem>>, %arg5: memref<1x128xf32, #tpu.memory_space<vmem>>, %arg6: memref<256x128xbf16, #tpu.memory_space<vmem>>) attributes {dimension_semantics = [#tpu.dimension_semantics<parallel>], iteration_bounds = array<i64: 1>, scalar_prefetch = 0 : i64, scratch_operands = 0 : i64, tpu.core_type = #tpu.core_type<tc>, window_params = [{transform_indices = @transform_0, window_bounds = array<i64: 256, 128>}, {pipeline_mode = #tpu.pipeline_mode<synchronous>, transform_indices = @transform_1, window_bounds = array<i64: 128, 256>}, {pipeline_mode = #tpu.pipeline_mode<synchronous>, transform_indices = @transform_2, window_bounds = array<i64: 1, 256>}, {pipeline_mode = #tpu.pipeline_mode<synchronous>, transform_indices = @transform_3, window_bounds = array<i64: 256, 128>}, {pipeline_mode = #tpu.pipeline_mode<synchronous>, transform_indices = @transform_4, window_bounds = array<i64: 1, 128>}, {transform_indices = @transform_5, window_bounds = array<i64: 256, 128>}]} {
    %c0 = arith.constant 0 : index
    %c0_0 = arith.constant 0 : index
    %0 = vector.load %arg1[%c0, %c0_0] : memref<256x128xf32, #tpu.memory_space<vmem>>, vector<256x128xf32>
    %1 = arith.truncf %0 : vector<256x128xf32> to vector<256x128xbf16>
    %c0_1 = arith.constant 0 : index
    %c0_2 = arith.constant 0 : index
    %2 = vector.load %arg2[%c0_1, %c0_2] : memref<128x256xbf16, #tpu.memory_space<vmem>>, vector<128x256xbf16>
    %cst = arith.constant dense<0.000000e+00> : vector<256x256xf32>
    %3 = tpu.matmul %1, %2, %cst {dimension_numbers = #tpu.dot_dimension_numbers<[1], [0], [0], [1], [0, 0, 1, 1], [], []>} : vector<256x128xbf16>, vector<128x256xbf16>, vector<256x256xf32> -> vector<256x256xf32>
    %c0_3 = arith.constant 0 : index
    %c0_4 = arith.constant 0 : index
    %4 = vector.load %arg3[%c0_3, %c0_4] : memref<1x256xf32, #tpu.memory_space<vmem>>, vector<1x256xf32>
    %5 = vector.broadcast %4 : vector<1x256xf32> to vector<256x256xf32>
    %6 = arith.addf %3, %5 : vector<256x256xf32>
    %cst_5 = arith.constant 0.000000e+00 : f32
    %7 = vector.broadcast %cst_5 : f32 to vector<256x256xf32>
    %8 = arith.maximumf %6, %7 : vector<256x256xf32>
    %9 = arith.truncf %8 : vector<256x256xf32> to vector<256x256xbf16>
    %c0_6 = arith.constant 0 : index
    %c0_7 = arith.constant 0 : index
    %10 = vector.load %arg4[%c0_6, %c0_7] : memref<256x128xbf16, #tpu.memory_space<vmem>>, vector<256x128xbf16>
    %cst_8 = arith.constant dense<0.000000e+00> : vector<256x128xf32>
    %11 = tpu.matmul %9, %10, %cst_8 {dimension_numbers = #tpu.dot_dimension_numbers<[1], [0], [0], [1], [0, 0, 1, 1], [], []>} : vector<256x256xbf16>, vector<256x128xbf16>, vector<256x128xf32> -> vector<256x128xf32>
    %c0_9 = arith.constant 0 : index
    %c0_10 = arith.constant 0 : index
    %12 = vector.load %arg5[%c0_9, %c0_10] : memref<1x128xf32, #tpu.memory_space<vmem>>, vector<1x128xf32>
    %13 = vector.broadcast %12 : vector<1x128xf32> to vector<256x128xf32>
    %14 = arith.addf %11, %13 : vector<256x128xf32>
    %15 = arith.truncf %14 : vector<256x128xf32> to vector<256x128xbf16>
    %c0_11 = arith.constant 0 : index
    %c0_12 = arith.constant 0 : index
    %16 = vector.load %arg6[%c0_11, %c0_12] : memref<256x128xbf16, #tpu.memory_space<vmem>>, vector<256x128xbf16>
    tpu.vector_store %arg6[%c0_11, %c0_12], %15 {strides = array<i32>} : memref<256x128xbf16, #tpu.memory_space<vmem>>, vector<256x128xbf16>,
    return
  }
  func.func @transform_0(%arg0: i32) -> (i32, i32) {
    %c0_i32 = arith.constant 0 : i32
    %c0_i32_0 = arith.constant 0 : i32
    return %arg0, %c0_i32 : i32, i32
  }
  func.func @transform_1(%arg0: i32) -> (i32, i32) {
    %c0_i32 = arith.constant 0 : i32
    %c0_i32_0 = arith.constant 0 : i32
    %c0_i32_1 = arith.constant 0 : i32
    return %c0_i32, %c0_i32_0 : i32, i32
  }
  func.func @transform_2(%arg0: i32) -> (i32, i32) {
    %c0_i32 = arith.constant 0 : i32
    %c0_i32_0 = arith.constant 0 : i32
    %c0_i32_1 = arith.constant 0 : i32
    return %c0_i32, %c0_i32_0 : i32, i32
  }
  func.func @transform_3(%arg0: i32) -> (i32, i32) {
    %c0_i32 = arith.constant 0 : i32
    %c0_i32_0 = arith.constant 0 : i32
    %c0_i32_1 = arith.constant 0 : i32
    return %c0_i32, %c0_i32_0 : i32, i32
  }
  func.func @transform_4(%arg0: i32) -> (i32, i32) {
    %c0_i32 = arith.constant 0 : i32
    %c0_i32_0 = arith.constant 0 : i32
    %c0_i32_1 = arith.constant 0 : i32
    return %c0_i32, %c0_i32_0 : i32, i32
  }
  func.func @transform_5(%arg0: i32) -> (i32, i32) {
    %c0_i32 = arith.constant 0 : i32
    %c0_i32_0 = arith.constant 0 : i32
    return %arg0, %c0_i32 : i32, i32
  }
}

</mosaic_0001>

<llo_original>
// kernel: tpu_custom_call.1
$region0: #{tpu_custom_call.1}
  #allocation0 [shape = 'u32[]', space=smem, size = 0x4, offset = 0x4, fixed_abs, tag = 'smem constant byte address 0x4 - core index']
  #allocation1 [shape = 'u32[144,128]{1,0:T(1,128)}', space=vmem, size = 0x12000, scoped, tag = 'internal scratch']
  %s0 = inlined_call_operand.hbm [shape: f32[256,128], index: 0, kind: input, shape index: {}]
  %s1 = inlined_call_operand.hbm [shape: bf16[128,256], index: 1, kind: input, shape index: {}]
  %s2 = inlined_call_operand.vmem [shape: f32[1,256], index: 2, kind: input, shape index: {}]
  %s3 = inlined_call_operand.hbm [shape: bf16[256,128], index: 3, kind: input, shape index: {}]
  %s4 = inlined_call_operand.vmem [shape: f32[1,128], index: 4, kind: input, shape index: {}]
  %s5 = inlined_call_operand.hbm [shape: bf16[256,128], index: 5, kind: output, shape index: {}]
  %s6 = sld [smem:[#allocation0]]
  $region42: #{tpu_custom_call.1} parent=0
    _
  %s8 = ssub.s32 1, %s6
  %s9 = scalar_select 0, %s8, %s6
  $region1: #{tpu_custom_call.1} parent=0
    #allocation2 [shape = 'u8[131072]{0}', space=vmem, size = 0x20000, scoped, tag = 'input window, operand 0, single buffered']
    #allocation3 [shape = 's32[1]{0}', space=sflag, size = 0x4, scoped, tag = 'scoped memory for tpu_custom_call.1']
    #allocation4 [shape = 's32[1]{0}', space=sflag, size = 0x4, scoped, tag = 'scoped memory for tpu_custom_call.1']
    #allocation5 [shape = 'u8[65536]{0}', space=vmem, size = 0x10000, scoped, tag = 'input window, operand 1, single buffered']
    #allocation6 [shape = 's32[1]{0}', space=sflag, size = 0x4, scoped, tag = 'scoped memory for tpu_custom_call.1']
    #allocation7 [shape = 'u8[65536]{0}', space=vmem, size = 0x10000, scoped, tag = 'input window, operand 3, single buffered']
    #allocation8 [shape = 'u8[65536]{0}', space=vmem, size = 0x10000, scoped, tag = 'output window, operand 0, single buffered']
    %10 = vsyncpa [#allocation3], 0
    %11 = vsyncpa [#allocation6], 0
    %12 = vsyncpa [#allocation4], 0
    // Predicated region
    $region2: #{tpu_custom_call.1} parent=1 // pred_check
      _
    $region3: #{tpu_custom_call.1} parent=1 // pred_check_branch
      %14 = sbr.rel (0) target = $region5
    $region4: #{tpu_custom_call.1} parent=1 // pred_region
      %s16 = ssub.s32 4096, 4096
      %17 = vsyncadd [#allocation3], %s16
      %s18 = sshll.u32 [#allocation2], 4
      %s19 = int_to_ptr.vmem [resolvable:$true] %s18
      %24 = dma.hbm_to_vmem [thread:$0]  %s0, 4096, %s19, [#allocation3], 128, 128, 8
    $region5: #{tpu_custom_call.1} parent=1 // pred_fallthru
      _
    // Predicated region
    $region6: #{tpu_custom_call.1} parent=1 // pred_check
      _
    $region7: #{tpu_custom_call.1} parent=1 // pred_check_branch
      %26 = sbr.rel (0) target = $region9
    $region8: #{tpu_custom_call.1} parent=1 // pred_region
      %s28 = ssub.s32 2048, 2048
      %29 = vsyncadd [#allocation6], %s28
      %s30 = sshll.u32 [#allocation5], 4
      %s31 = int_to_ptr.vmem [resolvable:$true] %s30
      %36 = dma.hbm_to_vmem [thread:$0]  %s1, 2048, %s31, [#allocation6], 128, 128, 8
    $region9: #{tpu_custom_call.1} parent=1 // pred_fallthru
      _
    // Predicated region
    $region10: #{tpu_custom_call.1} parent=1 // pred_check
      _
    $region11: #{tpu_custom_call.1} parent=1 // pred_check_branch
      %38 = sbr.rel (0) target = $region13
    $region12: #{tpu_custom_call.1} parent=1 // pred_region
      _
    $region13: #{tpu_custom_call.1} parent=1 // pred_fallthru
      _
    // Predicated region
    $region14: #{tpu_custom_call.1} parent=1 // pred_check
      _
    $region15: #{tpu_custom_call.1} parent=1 // pred_check_branch
      %40 = sbr.rel (0) target = $region17
    $region16: #{tpu_custom_call.1} parent=1 // pred_region
      %s42 = ssub.s32 2048, 2048
      %43 = vsyncadd [#allocation6], %s42
      %s44 = sshll.u32 [#allocation7], 4
      %s45 = int_to_ptr.vmem [resolvable:$true] %s44
      %50 = dma.hbm_to_vmem [thread:$0]  %s3, 2048, %s45, [#allocation6], 64, 64, 4
    $region17: #{tpu_custom_call.1} parent=1 // pred_fallthru
      _
    // Predicated region
    $region18: #{tpu_custom_call.1} parent=1 // pred_check
      _
    $region19: #{tpu_custom_call.1} parent=1 // pred_check_branch
      %52 = sbr.rel (0) target = $region21
    $region20: #{tpu_custom_call.1} parent=1 // pred_region
      _
    $region21: #{tpu_custom_call.1} parent=1 // pred_fallthru
      _
    // Predicated region
    $region22: #{tpu_custom_call.1} parent=1 // pred_check
      _
    $region23: #{tpu_custom_call.1} parent=1 // pred_check_branch
      %54 = sbr.rel (0) target = $region25
    $region24: #{tpu_custom_call.1} parent=1 // pred_region
      %55 = dma.done [#allocation3], 4096
    $region25: #{tpu_custom_call.1} parent=1 // pred_fallthru
      _
    // Predicated region
    $region26: #{tpu_custom_call.1} parent=1 // pred_check
      _
    $region27: #{tpu_custom_call.1} parent=1 // pred_check_branch
      %57 = sbr.rel (0) target = $region29
    $region28: #{tpu_custom_call.1} parent=1 // pred_region
      %58 = dma.done [#allocation6], 2048
    $region29: #{tpu_custom_call.1} parent=1 // pred_fallthru
      _
    // Predicated region
    $region30: #{tpu_custom_call.1} parent=1 // pred_check
      _
    $region31: #{tpu_custom_call.1} parent=1 // pred_check_branch
      %60 = sbr.rel (0) target = $region33
    $region32: #{tpu_custom_call.1} parent=1 // pred_region
      %61 = dma.done [#allocation6], 2048
    $region33: #{tpu_custom_call.1} parent=1 // pred_fallthru
      _
    %v63 = vld [vmem:[#allocation2] sm:$0xff]
    %v64 = vld [vmem:[#allocation2 + $0x8] sm:$0xff]
    %v65 = vld [vmem:[#allocation2 + $0x10] sm:$0xff]
    %v66 = vld [vmem:[#allocation2 + $0x18] sm:$0xff]
    %v67 = vld [vmem:[#allocation2 + $0x20] sm:$0xff]
    %v68 = vld [vmem:[#allocation2 + $0x28] sm:$0xff]
    %v69 = vld [vmem:[#allocation2 + $0x30] sm:$0xff]
    %v70 = vld [vmem:[#allocation2 + $0x38] sm:$0xff]
    %v71 = vld [vmem:[#allocation2 + $0x40] sm:$0xff]
    %v72 = vld [vmem:[#allocation2 + $0x48] sm:$0xff]
    %v73 = vld [vmem:[#allocation2 + $0x50] sm:$0xff]
    %v74 = vld [vmem:[#allocation2 + $0x58] sm:$0xff]
    %v75 = vld [vmem:[#allocation2 + $0x60] sm:$0xff]
    %v76 = vld [vmem:[#allocation2 + $0x68] sm:$0xff]
    %v77 = vld [vmem:[#allocation2 + $0x70] sm:$0xff]
    %v78 = vld [vmem:[#allocation2 + $0x78] sm:$0xff]
    %v79 = vld [vmem:[#allocation2 + $0x80] sm:$0xff]
    %v80 = vld [vmem:[#allocation2 + $0x88] sm:$0xff]
    %v81 = vld [vmem:[#allocation2 + $0x90] sm:$0xff]
    %v82 = vld [vmem:[#allocation2 + $0x98] sm:$0xff]
    %v83 = vld [vmem:[#allocation2 + $0xa0] sm:$0xff]
    %v84 = vld [vmem:[#allocation2 + $0xa8] sm:$0xff]
    %v85 = vld [vmem:[#allocation2 + $0xb0] sm:$0xff]
    %v86 = vld [vmem:[#allocation2 + $0xb8] sm:$0xff]
    %v87 = vld [vmem:[#allocation2 + $0xc0] sm:$0xff]
    %v88 = vld [vmem:[#allocation2 + $0xc8] sm:$0xff]
    %v89 = vld [vmem:[#allocation2 + $0xd0] sm:$0xff]
    %v90 = vld [vmem:[#allocation2 + $0xd8] sm:$0xff]
    %v91 = vld [vmem:[#allocation2 + $0xe0] sm:$0xff]
    %v92 = vld [vmem:[#allocation2 + $0xe8] sm:$0xff]
    %v93 = vld [vmem:[#allocation2 + $0xf0] sm:$0xff]
    %v94 = vld [vmem:[#allocation2 + $0xf8] sm:$0xff]
    %v95 = vpack.c.bf16 %v64, %v63
    %v96 = vpack.c.bf16 %v66, %v65
    %v97 = vpack.c.bf16 %v68, %v67
    %v98 = vpack.c.bf16 %v70, %v69
    %v99 = vpack.c.bf16 %v72, %v71
    %v100 = vpack.c.bf16 %v74, %v73
    %v101 = vpack.c.bf16 %v76, %v75
    %v102 = vpack.c.bf16 %v78, %v77
    %v103 = vpack.c.bf16 %v80, %v79
    %v104 = vpack.c.bf16 %v82, %v81
    %v105 = vpack.c.bf16 %v84, %v83
    %v106 = vpack.c.bf16 %v86, %v85
    %v107 = vpack.c.bf16 %v88, %v87
    %v108 = vpack.c.bf16 %v90, %v89
    %v109 = vpack.c.bf16 %v92, %v91
    %v110 = vpack.c.bf16 %v94, %v93
    %v111 = vld [vmem:[#allocation5] sm:$0xff]
    %v112 = vld [vmem:[#allocation5 + $0x8] sm:$0xff]
    %v113 = vld [vmem:[#allocation5 + $0x10] sm:$0xff]
    %v114 = vld [vmem:[#allocation5 + $0x18] sm:$0xff]
    %v115 = vld [vmem:[#allocation5 + $0x20] sm:$0xff]
    %v116 = vld [vmem:[#allocation5 + $0x28] sm:$0xff]
    %v117 = vld [vmem:[#allocation5 + $0x30] sm:$0xff]
    %v118 = vld [vmem:[#allocation5 + $0x38] sm:$0xff]
    %v119 = vld [vmem:[#allocation5 + $0x40] sm:$0xff]
    %v120 = vld [vmem:[#allocation5 + $0x48] sm:$0xff]
    %v121 = vld [vmem:[#allocation5 + $0x50] sm:$0xff]
    %v122 = vld [vmem:[#allocation5 + $0x58] sm:$0xff]
    %v123 = vld [vmem:[#allocation5 + $0x60] sm:$0xff]
    %v124 = vld [vmem:[#allocation5 + $0x68] sm:$0xff]
    %v125 = vld [vmem:[#allocation5 + $0x70] sm:$0xff]
    %v126 = vld [vmem:[#allocation5 + $0x78] sm:$0xff]
    %v127 = vld [vmem:[%s2] sm:$0x3]
    %v129 = vlaneseq
    %v130 = vshrl.u32 %v129, 7
    %v131 = vsub.s32 0, %v130
    %v132 = vrot.slane %v127, %v131
    %v133 = vlaneseq
    %v134 = vshrl.u32 %v133, 7
    %v135 = vsub.s32 1, %v134
    %v136 = vrot.slane %v127, %v135
    %v155 = vunpack.c.l.b16 %v111
    %v156 = vunpack.c.h.b16 %v111
    %v157 = vunpack.c.l.b16 %v112
    %v158 = vunpack.c.h.b16 %v112
    %v159 = vunpack.c.l.b16 %v113
    %v160 = vunpack.c.h.b16 %v113
    %v161 = vunpack.c.l.b16 %v114
    %v162 = vunpack.c.h.b16 %v114
    %v163 = vunpack.c.l.b16 %v115
    %v164 = vunpack.c.h.b16 %v115
    %v165 = vunpack.c.l.b16 %v116
    %v166 = vunpack.c.h.b16 %v116
    %v167 = vunpack.c.l.b16 %v117
    %v168 = vunpack.c.h.b16 %v117
    %v169 = vunpack.c.l.b16 %v118
    %v170 = vunpack.c.h.b16 %v118
    %v171 = vunpack.c.l.b16 %v119
    %v172 = vunpack.c.h.b16 %v119
    %v173 = vunpack.c.l.b16 %v120
    %v174 = vunpack.c.h.b16 %v120
    %v175 = vunpack.c.l.b16 %v121
    %v176 = vunpack.c.h.b16 %v121
    %v177 = vunpack.c.l.b16 %v122
    %v178 = vunpack.c.h.b16 %v122
    %v179 = vunpack.c.l.b16 %v123
    %v180 = vunpack.c.h.b16 %v123
    %v181 = vunpack.c.l.b16 %v124
    %v182 = vunpack.c.h.b16 %v124
    %v183 = vunpack.c.l.b16 %v125
    %v184 = vunpack.c.h.b16 %v125
    %v185 = vunpack.c.l.b16 %v126
    %v186 = vunpack.c.h.b16 %v126
    %v187 = vpack.c.b16 %v157, %v155
    %v188 = vpack.c.b16 %v158, %v156
    %v189 = vpack.c.b16 %v161, %v159
    %v190 = vpack.c.b16 %v162, %v160
    %v191 = vpack.c.b16 %v165, %v163
    %v192 = vpack.c.b16 %v166, %v164
    %v193 = vpack.c.b16 %v169, %v167
    %v194 = vpack.c.b16 %v170, %v168
    %v195 = vpack.c.b16 %v173, %v171
    %v196 = vpack.c.b16 %v174, %v172
    %v197 = vpack.c.b16 %v177, %v175
    %v198 = vpack.c.b16 %v178, %v176
    %v199 = vpack.c.b16 %v181, %v179
    %v200 = vpack.c.b16 %v182, %v180
    %v201 = vpack.c.b16 %v185, %v183
    %v202 = vpack.c.b16 %v186, %v184
    %219 = vmatprep.subr.bf16.mxu0 %v188
    %220 = vmatpush1.bf16.msra.mxu0 %v187
    %221 = vmatprep.subr.bf16.mxu0 %v190
    %222 = vmatpush1.bf16.msra.mxu0 %v189
    %223 = vmatprep.subr.bf16.mxu0 %v192
    %224 = vmatpush1.bf16.msra.mxu0 %v191
    %225 = vmatprep.subr.bf16.mxu0 %v194
    %226 = vmatpush1.bf16.msra.mxu0 %v193
    %227 = vmatprep.subr.bf16.mxu0 %v196
    %228 = vmatpush1.bf16.msra.mxu0 %v195
    %229 = vmatprep.subr.bf16.mxu0 %v198
    %230 = vmatpush1.bf16.msra.mxu0 %v197
    %231 = vmatprep.subr.bf16.mxu0 %v200
    %232 = vmatpush1.bf16.msra.mxu0 %v199
    %233 = vmatprep.subr.bf16.mxu0 %v202
    %234 = vmatpush1.bf16.msra.mxu0 %v201
    %235 = vmatprep.subr.bf16.mxu0 0
    %236 = vmatpush1.bf16.msra.mxu0 0
    %237 = vmatprep.subr.bf16.mxu0 0
    %238 = vmatpush1.bf16.msra.mxu0 0
    %239 = vmatprep.subr.bf16.mxu0 0
    %240 = vmatpush1.bf16.msra.mxu0 0
    %241 = vmatprep.subr.bf16.mxu0 0
    %242 = vmatpush1.bf16.msra.mxu0 0
    %243 = vmatprep.subr.bf16.mxu0 0
    %244 = vmatpush1.bf16.msra.mxu0 0
    %245 = vmatprep.subr.bf16.mxu0 0
    %246 = vmatpush1.bf16.msra.mxu0 0
    %247 = vmatprep.subr.bf16.mxu0 0
    %248 = vmatpush1.bf16.msra.mxu0 0
    %249 = vmatprep.subr.bf16.mxu0 0
    %250 = vmatpush1.bf16.msra.mxu0 0
    %251 = vmatprep.mubr.bf16.mxu0 0
    %252 = vmatmul.mubr.bf16.gmra.mrb[0].mxu0 %v95
    %v253 = vpop.f32.mrb[0].mxu0
    %v254 = vadd.f32 %v132, %v253
    %v255 = vpop.f32.mrb[0].mxu0
    %v256 = vadd.f32 %v136, %v255
    %v257 = vpop.f32.mrb[0].mxu0
    %v258 = vadd.f32 %v132, %v257
    %v259 = vpop.f32.mrb[0].mxu0
    %v260 = vadd.f32 %v136, %v259
    %261 = vmatprep.mubr.bf16.mxu0 0
    %262 = vmatmul.mubr.bf16.gmra.mrb[0].mxu0 %v96
    %v263 = vpop.f32.mrb[0].mxu0
    %v264 = vadd.f32 %v132, %v263
    %v265 = vpop.f32.mrb[0].mxu0
    %v266 = vadd.f32 %v136, %v265
    %v267 = vpop.f32.mrb[0].mxu0
    %v268 = vadd.f32 %v132, %v267
    %v269 = vpop.f32.mrb[0].mxu0
    %v270 = vadd.f32 %v136, %v269
    %271 = vmatprep.mubr.bf16.mxu0 0
    %272 = vmatmul.mubr.bf16.gmra.mrb[0].mxu0 %v97
    %v273 = vpop.f32.mrb[0].mxu0
    %v274 = vadd.f32 %v132, %v273
    %v275 = vpop.f32.mrb[0].mxu0
    %v276 = vadd.f32 %v136, %v275
    %v277 = vpop.f32.mrb[0].mxu0
    %v278 = vadd.f32 %v132, %v277
    %v279 = vpop.f32.mrb[0].mxu0
    %v280 = vadd.f32 %v136, %v279
    %281 = vmatprep.mubr.bf16.mxu0 0
    %282 = vmatmul.mubr.bf16.gmra.mrb[0].mxu0 %v98
    %v283 = vpop.f32.mrb[0].mxu0
    %v284 = vadd.f32 %v132, %v283
    %v285 = vpop.f32.mrb[0].mxu0
    %v286 = vadd.f32 %v136, %v285
    %v287 = vpop.f32.mrb[0].mxu0
    %v288 = vadd.f32 %v132, %v287
    %v289 = vpop.f32.mrb[0].mxu0
    %v290 = vadd.f32 %v136, %v289
    %291 = vmatprep.mubr.bf16.mxu0 0
    %292 = vmatmul.mubr.bf16.gmra.mrb[0].mxu0 %v99
    %v293 = vpop.f32.mrb[0].mxu0
    %v294 = vadd.f32 %v132, %v293
    %v295 = vpop.f32.mrb[0].mxu0
    %v296 = vadd.f32 %v136, %v295
    %v297 = vpop.f32.mrb[0].mxu0
    %v298 = vadd.f32 %v132, %v297
    %v299 = vpop.f32.mrb[0].mxu0
    %v300 = vadd.f32 %v136, %v299
    %301 = vmatprep.mubr.bf16.mxu0 0
    %302 = vmatmul.mubr.bf16.gmra.mrb[0].mxu0 %v100
    %v303 = vpop.f32.mrb[0].mxu0
    %v304 = vadd.f32 %v132, %v303
    %v305 = vpop.f32.mrb[0].mxu0
    %v306 = vadd.f32 %v136, %v305
    %v307 = vpop.f32.mrb[0].mxu0
    %v308 = vadd.f32 %v132, %v307
    %v309 = vpop.f32.mrb[0].mxu0
    %v310 = vadd.f32 %v136, %v309
    %311 = vmatprep.mubr.bf16.mxu0 0
    %312 = vmatmul.mubr.bf16.gmra.mrb[0].mxu0 %v101
    %v313 = vpop.f32.mrb[0].mxu0
    %v314 = vadd.f32 %v132, %v313
    %v315 = vpop.f32.mrb[0].mxu0
    %v316 = vadd.f32 %v136, %v315
    %v317 = vpop.f32.mrb[0].mxu0
    %v318 = vadd.f32 %v132, %v317
    %v319 = vpop.f32.mrb[0].mxu0
    %v320 = vadd.f32 %v136, %v319
    %321 = vmatprep.mubr.bf16.mxu0 0
    %322 = vmatmul.mubr.bf16.gmra.mrb[0].mxu0 %v102
    %v323 = vpop.f32.mrb[0].mxu0
    %v324 = vadd.f32 %v132, %v323
    %v325 = vpop.f32.mrb[0].mxu0
    %v326 = vadd.f32 %v136, %v325
    %v327 = vpop.f32.mrb[0].mxu0
    %v328 = vadd.f32 %v132, %v327
    %v329 = vpop.f32.mrb[0].mxu0
    %v330 = vadd.f32 %v136, %v329
    %331 = vmatprep.mubr.bf16.mxu0 0
    %332 = vmatmul.mubr.bf16.gmra.mrb[0].mxu0 %v103
    %v333 = vpop.f32.mrb[0].mxu0
    %v334 = vadd.f32 %v132, %v333
    %v335 = vpop.f32.mrb[0].mxu0
    %v336 = vadd.f32 %v136, %v335
    %v337 = vpop.f32.mrb[0].mxu0
    %v338 = vadd.f32 %v132, %v337
    %v339 = vpop.f32.mrb[0].mxu0
    %v340 = vadd.f32 %v136, %v339
    %341 = vmatprep.mubr.bf16.mxu0 0
    %342 = vmatmul.mubr.bf16.gmra.mrb[0].mxu0 %v104
    %v343 = vpop.f32.mrb[0].mxu0
    %v344 = vadd.f32 %v132, %v343
    %v345 = vpop.f32.mrb[0].mxu0
    %v346 = vadd.f32 %v136, %v345
    %v347 = vpop.f32.mrb[0].mxu0
    %v348 = vadd.f32 %v132, %v347
    %v349 = vpop.f32.mrb[0].mxu0
    %v350 = vadd.f32 %v136, %v349
    %351 = vmatprep.mubr.bf16.mxu0 0
    %352 = vmatmul.mubr.bf16.gmra.mrb[0].mxu0 %v105
    %v353 = vpop.f32.mrb[0].mxu0
    %v354 = vadd.f32 %v132, %v353
    %v355 = vpop.f32.mrb[0].mxu0
    %v356 = vadd.f32 %v136, %v355
    %v357 = vpop.f32.mrb[0].mxu0
    %v358 = vadd.f32 %v132, %v357
    %v359 = vpop.f32.mrb[0].mxu0
    %v360 = vadd.f32 %v136, %v359
    %361 = vmatprep.mubr.bf16.mxu0 0
    %362 = vmatmul.mubr.bf16.gmra.mrb[0].mxu0 %v106
    %v363 = vpop.f32.mrb[0].mxu0
    %v364 = vadd.f32 %v132, %v363
    %v365 = vpop.f32.mrb[0].mxu0
    %v366 = vadd.f32 %v136, %v365
    %v367 = vpop.f32.mrb[0].mxu0
    %v368 = vadd.f32 %v132, %v367
    %v369 = vpop.f32.mrb[0].mxu0
    %v370 = vadd.f32 %v136, %v369
    %371 = vmatprep.mubr.bf16.mxu0 0
    %372 = vmatmul.mubr.bf16.gmra.mrb[0].mxu0 %v107
    %v373 = vpop.f32.mrb[0].mxu0
    %v374 = vadd.f32 %v132, %v373
    %v375 = vpop.f32.mrb[0].mxu0
    %v376 = vadd.f32 %v136, %v375
    %v377 = vpop.f32.mrb[0].mxu0
    %v378 = vadd.f32 %v132, %v377
    %v379 = vpop.f32.mrb[0].mxu0
    %v380 = vadd.f32 %v136, %v379
    %381 = vmatprep.mubr.bf16.mxu0 0
    %382 = vmatmul.mubr.bf16.gmra.mrb[0].mxu0 %v108
    %v383 = vpop.f32.mrb[0].mxu0
    %v384 = vadd.f32 %v132, %v383
    %v385 = vpop.f32.mrb[0].mxu0
    %v386 = vadd.f32 %v136, %v385
    %v387 = vpop.f32.mrb[0].mxu0
    %v388 = vadd.f32 %v132, %v387
    %v389 = vpop.f32.mrb[0].mxu0
    %v390 = vadd.f32 %v136, %v389
    %391 = vmatprep.mubr.bf16.mxu0 0
    %392 = vmatmul.mubr.bf16.gmra.mrb[0].mxu0 %v109
    %v393 = vpop.f32.mrb[0].mxu0
    %v394 = vadd.f32 %v132, %v393
    %v395 = vpop.f32.mrb[0].mxu0
    %v396 = vadd.f32 %v136, %v395
    %v397 = vpop.f32.mrb[0].mxu0
    %v398 = vadd.f32 %v132, %v397
    %v399 = vpop.f32.mrb[0].mxu0
    %v400 = vadd.f32 %v136, %v399
    %401 = vmatprep.mubr.bf16.mxu0 0
    %402 = vmatmul.mubr.bf16.gmra.mrb[0].mxu0 %v110
    %v403 = vpop.f32.mrb[0].mxu0
    %v404 = vadd.f32 %v132, %v403
    %v405 = vpop.f32.mrb[0].mxu0
    %v406 = vadd.f32 %v136, %v405
    %v407 = vpop.f32.mrb[0].mxu0
    %v408 = vadd.f32 %v132, %v407
    %v409 = vpop.f32.mrb[0].mxu0
    %v410 = vadd.f32 %v136, %v409
    %411 = vdwg.mxu0
    %v412 = vmax.f32 %v254, 0.0
    %v413 = vmax.f32 %v256, 0.0
    %v414 = vmax.f32 %v258, 0.0
    %v415 = vmax.f32 %v260, 0.0
    %v416 = vmax.f32 %v264, 0.0
    %v417 = vmax.f32 %v266, 0.0
    %v418 = vmax.f32 %v268, 0.0
    %v419 = vmax.f32 %v270, 0.0
    %v420 = vmax.f32 %v274, 0.0
    %v421 = vmax.f32 %v276, 0.0
    %v422 = vmax.f32 %v278, 0.0
    %v423 = vmax.f32 %v280, 0.0
    %v424 = vmax.f32 %v284, 0.0
    %v425 = vmax.f32 %v286, 0.0
    %v426 = vmax.f32 %v288, 0.0
    %v427 = vmax.f32 %v290, 0.0
    %v428 = vmax.f32 %v294, 0.0
    %v429 = vmax.f32 %v296, 0.0
    %v430 = vmax.f32 %v298, 0.0
    %v431 = vmax.f32 %v300, 0.0
    %v432 = vmax.f32 %v304, 0.0
    %v433 = vmax.f32 %v306, 0.0
    %v434 = vmax.f32 %v308, 0.0
    %v435 = vmax.f32 %v310, 0.0
    %v436 = vmax.f32 %v314, 0.0
    %v437 = vmax.f32 %v316, 0.0
    %v438 = vmax.f32 %v318, 0.0
    %v439 = vmax.f32 %v320, 0.0
    %v440 = vmax.f32 %v324, 0.0
    %v441 = vmax.f32 %v326, 0.0
    %v442 = vmax.f32 %v328, 0.0
    %v443 = vmax.f32 %v330, 0.0
    %v444 = vmax.f32 %v334, 0.0
    %v445 = vmax.f32 %v336, 0.0
    %v446 = vmax.f32 %v338, 0.0
    %v447 = vmax.f32 %v340, 0.0
    %v448 = vmax.f32 %v344, 0.0
    %v449 = vmax.f32 %v346, 0.0
    %v450 = vmax.f32 %v348, 0.0
    %v451 = vmax.f32 %v350, 0.0
    %v452 = vmax.f32 %v354, 0.0
    %v453 = vmax.f32 %v356, 0.0
    %v454 = vmax.f32 %v358, 0.0
    %v455 = vmax.f32 %v360, 0.0
    %v456 = vmax.f32 %v364, 0.0
    %v457 = vmax.f32 %v366, 0.0
    %v458 = vmax.f32 %v368, 0.0
    %v459 = vmax.f32 %v370, 0.0
    %v460 = vmax.f32 %v374, 0.0
    %v461 = vmax.f32 %v376, 0.0
    %v462 = vmax.f32 %v378, 0.0
    %v463 = vmax.f32 %v380, 0.0
    %v464 = vmax.f32 %v384, 0.0
    %v465 = vmax.f32 %v386, 0.0
    %v466 = vmax.f32 %v388, 0.0
    %v467 = vmax.f32 %v390, 0.0
    %v468 = vmax.f32 %v394, 0.0
    %v469 = vmax.f32 %v396, 0.0
    %v470 = vmax.f32 %v398, 0.0
    %v471 = vmax.f32 %v400, 0.0
    %v472 = vmax.f32 %v404, 0.0
    %v473 = vmax.f32 %v406, 0.0
    %v474 = vmax.f32 %v408, 0.0
    %v475 = vmax.f32 %v410, 0.0
    %v476 = vpack.c.bf16 %v414, %v412
    %v477 = vpack.c.bf16 %v415, %v413
    %v478 = vpack.c.bf16 %v418, %v416
    %v479 = vpack.c.bf16 %v419, %v417
    %v480 = vpack.c.bf16 %v422, %v420
    %v481 = vpack.c.bf16 %v423, %v421
    %v482 = vpack.c.bf16 %v426, %v424
    %v483 = vpack.c.bf16 %v427, %v425
    %v484 = vpack.c.bf16 %v430, %v428
    %v485 = vpack.c.bf16 %v431, %v429
    %v486 = vpack.c.bf16 %v434, %v432
    %v487 = vpack.c.bf16 %v435, %v433
    %v488 = vpack.c.bf16 %v438, %v436
    %v489 = vpack.c.bf16 %v439, %v437
    %v490 = vpack.c.bf16 %v442, %v440
    %v491 = vpack.c.bf16 %v443, %v441
    %v492 = vpack.c.bf16 %v446, %v444
    %v493 = vpack.c.bf16 %v447, %v445
    %v494 = vpack.c.bf16 %v450, %v448
    %v495 = vpack.c.bf16 %v451, %v449
    %v496 = vpack.c.bf16 %v454, %v452
    %v497 = vpack.c.bf16 %v455, %v453
    %v498 = vpack.c.bf16 %v458, %v456
    %v499 = vpack.c.bf16 %v459, %v457
    %v500 = vpack.c.bf16 %v462, %v460
    %v501 = vpack.c.bf16 %v463, %v461
    %v502 = vpack.c.bf16 %v466, %v464
    %v503 = vpack.c.bf16 %v467, %v465
    %v504 = vpack.c.bf16 %v470, %v468
    %v505 = vpack.c.bf16 %v471, %v469
    %v506 = vpack.c.bf16 %v474, %v472
    %v507 = vpack.c.bf16 %v475, %v473
    %v508 = vld [vmem:[#allocation7] sm:$0xf]
    %v509 = vld [vmem:[#allocation7 + $0x4] sm:$0xf]
    %v510 = vld [vmem:[#allocation7 + $0x8] sm:$0xf]
    %v511 = vld [vmem:[#allocation7 + $0xc] sm:$0xf]
    %v512 = vld [vmem:[#allocation7 + $0x10] sm:$0xf]
    %v513 = vld [vmem:[#allocation7 + $0x14] sm:$0xf]
    %v514 = vld [vmem:[#allocation7 + $0x18] sm:$0xf]
    %v515 = vld [vmem:[#allocation7 + $0x1c] sm:$0xf]
    %v516 = vld [vmem:[#allocation7 + $0x20] sm:$0xf]
    %v517 = vld [vmem:[#allocation7 + $0x24] sm:$0xf]
    %v518 = vld [vmem:[#allocation7 + $0x28] sm:$0xf]
    %v519 = vld [vmem:[#allocation7 + $0x2c] sm:$0xf]
    %v520 = vld [vmem:[#allocation7 + $0x30] sm:$0xf]
    %v521 = vld [vmem:[#allocation7 + $0x34] sm:$0xf]
    %v522 = vld [vmem:[#allocation7 + $0x38] sm:$0xf]
    %v523 = vld [vmem:[#allocation7 + $0x3c] sm:$0xf]
    %v524 = vld [vmem:[#allocation7 + $0x40] sm:$0xf]
    %v525 = vld [vmem:[#allocation7 + $0x44] sm:$0xf]
    %v526 = vld [vmem:[#allocation7 + $0x48] sm:$0xf]
    %v527 = vld [vmem:[#allocation7 + $0x4c] sm:$0xf]
    %v528 = vld [vmem:[#allocation7 + $0x50] sm:$0xf]
    %v529 = vld [vmem:[#allocation7 + $0x54] sm:$0xf]
    %v530 = vld [vmem:[#allocation7 + $0x58] sm:$0xf]
    %v531 = vld [vmem:[#allocation7 + $0x5c] sm:$0xf]
    %v532 = vld [vmem:[#allocation7 + $0x60] sm:$0xf]
    %v533 = vld [vmem:[#allocation7 + $0x64] sm:$0xf]
    %v534 = vld [vmem:[#allocation7 + $0x68] sm:$0xf]
    %v535 = vld [vmem:[#allocation7 + $0x6c] sm:$0xf]
    %v536 = vld [vmem:[#allocation7 + $0x70] sm:$0xf]
    %v537 = vld [vmem:[#allocation7 + $0x74] sm:$0xf]
    %v538 = vld [vmem:[#allocation7 + $0x78] sm:$0xf]
    %v539 = vld [vmem:[#allocation7 + $0x7c] sm:$0xf]
    %v540 = vld [vmem:[%s4] sm:$0x1]
    %v542 = vlaneseq
    %v543 = vshrl.u32 %v542, 7
    %v544 = vsub.s32 0, %v543
    %v545 = vrot.slane %v540, %v544
    %v579 = vunpack.c.l.b16 %v508
    %v580 = vunpack.c.l.b16 %v509
    %v581 = vunpack.c.l.b16 %v510
    %v582 = vunpack.c.l.b16 %v511
    %v583 = vunpack.c.l.b16 %v512
    %v584 = vunpack.c.l.b16 %v513
    %v585 = vunpack.c.l.b16 %v514
    %v586 = vunpack.c.l.b16 %v515
    %v587 = vunpack.c.l.b16 %v516
    %v588 = vunpack.c.l.b16 %v517
    %v589 = vunpack.c.l.b16 %v518
    %v590 = vunpack.c.l.b16 %v519
    %v591 = vunpack.c.l.b16 %v520
    %v592 = vunpack.c.l.b16 %v521
    %v593 = vunpack.c.l.b16 %v522
    %v594 = vunpack.c.l.b16 %v523
    %v595 = vunpack.c.l.b16 %v524
    %v596 = vunpack.c.l.b16 %v525
    %v597 = vunpack.c.l.b16 %v526
    %v598 = vunpack.c.l.b16 %v527
    %v599 = vunpack.c.l.b16 %v528
    %v600 = vunpack.c.l.b16 %v529
    %v601 = vunpack.c.l.b16 %v530
    %v602 = vunpack.c.l.b16 %v531
    %v603 = vunpack.c.l.b16 %v532
    %v604 = vunpack.c.l.b16 %v533
    %v605 = vunpack.c.l.b16 %v534
    %v606 = vunpack.c.l.b16 %v535
    %v607 = vunpack.c.l.b16 %v536
    %v608 = vunpack.c.l.b16 %v537
    %v609 = vunpack.c.l.b16 %v538
    %v610 = vunpack.c.l.b16 %v539
    %v611 = vpack.c.b16 %v580, %v579
    %v612 = vpack.c.b16 %v582, %v581
    %v613 = vpack.c.b16 %v584, %v583
    %v614 = vpack.c.b16 %v586, %v585
    %v615 = vpack.c.b16 %v588, %v587
    %v616 = vpack.c.b16 %v590, %v589
    %v617 = vpack.c.b16 %v592, %v591
    %v618 = vpack.c.b16 %v594, %v593
    %v619 = vpack.c.b16 %v596, %v595
    %v620 = vpack.c.b16 %v598, %v597
    %v621 = vpack.c.b16 %v600, %v599
    %v622 = vpack.c.b16 %v602, %v601
    %v623 = vpack.c.b16 %v604, %v603
    %v624 = vpack.c.b16 %v606, %v605
    %v625 = vpack.c.b16 %v608, %v607
    %v626 = vpack.c.b16 %v610, %v609
    %643 = vmatprep.subr.bf16.mxu0 0
    %644 = vmatpush1.bf16.msra.mxu0 %v611
    %645 = vmatprep.subr.bf16.mxu0 0
    %646 = vmatpush1.bf16.msra.mxu0 %v612
    %647 = vmatprep.subr.bf16.mxu0 0
    %648 = vmatpush1.bf16.msra.mxu0 %v613
    %649 = vmatprep.subr.bf16.mxu0 0
    %650 = vmatpush1.bf16.msra.mxu0 %v614
    %651 = vmatprep.subr.bf16.mxu0 0
    %652 = vmatpush1.bf16.msra.mxu0 %v615
    %653 = vmatprep.subr.bf16.mxu0 0
    %654 = vmatpush1.bf16.msra.mxu0 %v616
    %655 = vmatprep.subr.bf16.mxu0 0
    %656 = vmatpush1.bf16.msra.mxu0 %v617
    %657 = vmatprep.subr.bf16.mxu0 0
    %658 = vmatpush1.bf16.msra.mxu0 %v618
    %659 = vmatprep.subr.bf16.mxu0 0
    %660 = vmatpush1.bf16.msra.mxu0 %v619
    %661 = vmatprep.subr.bf16.mxu0 0
    %662 = vmatpush1.bf16.msra.mxu0 %v620
    %663 = vmatprep.subr.bf16.mxu0 0
    %664 = vmatpush1.bf16.msra.mxu0 %v621
    %665 = vmatprep.subr.bf16.mxu0 0
    %666 = vmatpush1.bf16.msra.mxu0 %v622
    %667 = vmatprep.subr.bf16.mxu0 0
    %668 = vmatpush1.bf16.msra.mxu0 %v623
    %669 = vmatprep.subr.bf16.mxu0 0
    %670 = vmatpush1.bf16.msra.mxu0 %v624
    %671 = vmatprep.subr.bf16.mxu0 0
    %672 = vmatpush1.bf16.msra.mxu0 %v625
    %673 = vmatprep.subr.bf16.mxu0 0
    %674 = vmatpush1.bf16.msra.mxu0 %v626
    %675 = vmatprep.mubr.bf16.mxu0 %v477
    %676 = vmatmul.mubr.bf16.gmra.mrb[0].mxu0 %v476
    %v677 = vpop.f32.mrb[0].mxu0
    %v678 = vadd.f32 %v545, %v677
    %v679 = vpop.f32.mrb[0].mxu0
    %v680 = vpop.f32.mrb[0].mxu0
    %v681 = vadd.f32 %v545, %v680
    %v682 = vpop.f32.mrb[0].mxu0
    %683 = vmatprep.mubr.bf16.mxu0 %v479
    %684 = vmatmul.mubr.bf16.gmra.mrb[0].mxu0 %v478
    %v685 = vpop.f32.mrb[0].mxu0
    %v686 = vadd.f32 %v545, %v685
    %v687 = vpop.f32.mrb[0].mxu0
    %v688 = vpop.f32.mrb[0].mxu0
    %v689 = vadd.f32 %v545, %v688
    %v690 = vpop.f32.mrb[0].mxu0
    %691 = vmatprep.mubr.bf16.mxu0 %v481
    %692 = vmatmul.mubr.bf16.gmra.mrb[0].mxu0 %v480
    %v693 = vpop.f32.mrb[0].mxu0
    %v694 = vadd.f32 %v545, %v693
    %v695 = vpop.f32.mrb[0].mxu0
    %v696 = vpop.f32.mrb[0].mxu0
    %v697 = vadd.f32 %v545, %v696
    %v698 = vpop.f32.mrb[0].mxu0
    %699 = vmatprep.mubr.bf16.mxu0 %v483
    %700 = vmatmul.mubr.bf16.gmra.mrb[0].mxu0 %v482
    %v701 = vpop.f32.mrb[0].mxu0
    %v702 = vadd.f32 %v545, %v701
    %v703 = vpop.f32.mrb[0].mxu0
    %v704 = vpop.f32.mrb[0].mxu0
    %v705 = vadd.f32 %v545, %v704
    %v706 = vpop.f32.mrb[0].mxu0
    %707 = vmatprep.mubr.bf16.mxu0 %v485
    %708 = vmatmul.mubr.bf16.gmra.mrb[0].mxu0 %v484
    %v709 = vpop.f32.mrb[0].mxu0
    %v710 = vadd.f32 %v545, %v709
    %v711 = vpop.f32.mrb[0].mxu0
    %v712 = vpop.f32.mrb[0].mxu0
    %v713 = vadd.f32 %v545, %v712
    %v714 = vpop.f32.mrb[0].mxu0
    %715 = vmatprep.mubr.bf16.mxu0 %v487
    %716 = vmatmul.mubr.bf16.gmra.mrb[0].mxu0 %v486
    %v717 = vpop.f32.mrb[0].mxu0
    %v718 = vadd.f32 %v545, %v717
    %v719 = vpop.f32.mrb[0].mxu0
    %v720 = vpop.f32.mrb[0].mxu0
    %v721 = vadd.f32 %v545, %v720
    %v722 = vpop.f32.mrb[0].mxu0
    %723 = vmatprep.mubr.bf16.mxu0 %v489
    %724 = vmatmul.mubr.bf16.gmra.mrb[0].mxu0 %v488
    %v725 = vpop.f32.mrb[0].mxu0
    %v726 = vadd.f32 %v545, %v725
    %v727 = vpop.f32.mrb[0].mxu0
    %v728 = vpop.f32.mrb[0].mxu0
    %v729 = vadd.f32 %v545, %v728
    %v730 = vpop.f32.mrb[0].mxu0
    %731 = vmatprep.mubr.bf16.mxu0 %v491
    %732 = vmatmul.mubr.bf16.gmra.mrb[0].mxu0 %v490
    %v733 = vpop.f32.mrb[0].mxu0
    %v734 = vadd.f32 %v545, %v733
    %v735 = vpop.f32.mrb[0].mxu0
    %v736 = vpop.f32.mrb[0].mxu0
    %v737 = vadd.f32 %v545, %v736
    %v738 = vpop.f32.mrb[0].mxu0
    %739 = vmatprep.mubr.bf16.mxu0 %v493
    %740 = vmatmul.mubr.bf16.gmra.mrb[0].mxu0 %v492
    %v741 = vpop.f32.mrb[0].mxu0
    %v742 = vadd.f32 %v545, %v741
    %v743 = vpop.f32.mrb[0].mxu0
    %v744 = vpop.f32.mrb[0].mxu0
    %v745 = vadd.f32 %v545, %v744
    %v746 = vpop.f32.mrb[0].mxu0
    %747 = vmatprep.mubr.bf16.mxu0 %v495
    %748 = vmatmul.mubr.bf16.gmra.mrb[0].mxu0 %v494
    %v749 = vpop.f32.mrb[0].mxu0
    %v750 = vadd.f32 %v545, %v749
    %v751 = vpop.f32.mrb[0].mxu0
    %v752 = vpop.f32.mrb[0].mxu0
    %v753 = vadd.f32 %v545, %v752
    %v754 = vpop.f32.mrb[0].mxu0
    %755 = vmatprep.mubr.bf16.mxu0 %v497
    %756 = vmatmul.mubr.bf16.gmra.mrb[0].mxu0 %v496
    %v757 = vpop.f32.mrb[0].mxu0
    %v758 = vadd.f32 %v545, %v757
    %v759 = vpop.f32.mrb[0].mxu0
    %v760 = vpop.f32.mrb[0].mxu0
    %v761 = vadd.f32 %v545, %v760
    %v762 = vpop.f32.mrb[0].mxu0
    %763 = vmatprep.mubr.bf16.mxu0 %v499
    %764 = vmatmul.mubr.bf16.gmra.mrb[0].mxu0 %v498
    %v765 = vpop.f32.mrb[0].mxu0
    %v766 = vadd.f32 %v545, %v765
    %v767 = vpop.f32.mrb[0].mxu0
    %v768 = vpop.f32.mrb[0].mxu0
    %v769 = vadd.f32 %v545, %v768
    %v770 = vpop.f32.mrb[0].mxu0
    %771 = vmatprep.mubr.bf16.mxu0 %v501
    %772 = vmatmul.mubr.bf16.gmra.mrb[0].mxu0 %v500
    %v773 = vpop.f32.mrb[0].mxu0
    %v774 = vadd.f32 %v545, %v773
    %v775 = vpop.f32.mrb[0].mxu0
    %v776 = vpop.f32.mrb[0].mxu0
    %v777 = vadd.f32 %v545, %v776
    %v778 = vpop.f32.mrb[0].mxu0
    %779 = vmatprep.mubr.bf16.mxu0 %v503
    %780 = vmatmul.mubr.bf16.gmra.mrb[0].mxu0 %v502
    %v781 = vpop.f32.mrb[0].mxu0
    %v782 = vadd.f32 %v545, %v781
    %v783 = vpop.f32.mrb[0].mxu0
    %v784 = vpop.f32.mrb[0].mxu0
    %v785 = vadd.f32 %v545, %v784
    %v786 = vpop.f32.mrb[0].mxu0
    %787 = vmatprep.mubr.bf16.mxu0 %v505
    %788 = vmatmul.mubr.bf16.gmra.mrb[0].mxu0 %v504
    %v789 = vpop.f32.mrb[0].mxu0
    %v790 = vadd.f32 %v545, %v789
    %v791 = vpop.f32.mrb[0].mxu0
    %v792 = vpop.f32.mrb[0].mxu0
    %v793 = vadd.f32 %v545, %v792
    %v794 = vpop.f32.mrb[0].mxu0
    %795 = vmatprep.mubr.bf16.mxu0 %v507
    %796 = vmatmul.mubr.bf16.gmra.mrb[0].mxu0 %v506
    %v797 = vpop.f32.mrb[0].mxu0
    %v798 = vadd.f32 %v545, %v797
    %v799 = vpop.f32.mrb[0].mxu0
    %v800 = vpop.f32.mrb[0].mxu0
    %v801 = vadd.f32 %v545, %v800
    %v802 = vpop.f32.mrb[0].mxu0
    %803 = vdwg.mxu0
    %v804 = vpack.c.bf16 %v681, %v678
    %v805 = vpack.c.bf16 %v689, %v686
    %v806 = vpack.c.bf16 %v697, %v694
    %v807 = vpack.c.bf16 %v705, %v702
    %v808 = vpack.c.bf16 %v713, %v710
    %v809 = vpack.c.bf16 %v721, %v718
    %v810 = vpack.c.bf16 %v729, %v726
    %v811 = vpack.c.bf16 %v737, %v734
    %v812 = vpack.c.bf16 %v745, %v742
    %v813 = vpack.c.bf16 %v753, %v750
    %v814 = vpack.c.bf16 %v761, %v758
    %v815 = vpack.c.bf16 %v769, %v766
    %v816 = vpack.c.bf16 %v777, %v774
    %v817 = vpack.c.bf16 %v785, %v782
    %v818 = vpack.c.bf16 %v793, %v790
    %v819 = vpack.c.bf16 %v801, %v798
    %v836 = vunpack.c.l.b16 %v804
    %v837 = vunpack.c.h.b16 %v804
    %v838 = vunpack.c.l.b16 %v805
    %v839 = vunpack.c.h.b16 %v805
    %v840 = vunpack.c.l.b16 %v806
    %v841 = vunpack.c.h.b16 %v806
    %v842 = vunpack.c.l.b16 %v807
    %v843 = vunpack.c.h.b16 %v807
    %v844 = vunpack.c.l.b16 %v808
    %v845 = vunpack.c.h.b16 %v808
    %v846 = vunpack.c.l.b16 %v809
    %v847 = vunpack.c.h.b16 %v809
    %v848 = vunpack.c.l.b16 %v810
    %v849 = vunpack.c.h.b16 %v810
    %v850 = vunpack.c.l.b16 %v811
    %v851 = vunpack.c.h.b16 %v811
    %v852 = vunpack.c.l.b16 %v812
    %v853 = vunpack.c.h.b16 %v812
    %v854 = vunpack.c.l.b16 %v813
    %v855 = vunpack.c.h.b16 %v813
    %v856 = vunpack.c.l.b16 %v814
    %v857 = vunpack.c.h.b16 %v814
    %v858 = vunpack.c.l.b16 %v815
    %v859 = vunpack.c.h.b16 %v815
    %v860 = vunpack.c.l.b16 %v816
    %v861 = vunpack.c.h.b16 %v816
    %v862 = vunpack.c.l.b16 %v817
    %v863 = vunpack.c.h.b16 %v817
    %v864 = vunpack.c.l.b16 %v818
    %v865 = vunpack.c.h.b16 %v818
    %v866 = vunpack.c.l.b16 %v819
    %v867 = vunpack.c.h.b16 %v819
    %v868 = vpack.c.b16 %v836, %v836
    %v869 = vpack.c.b16 %v837, %v837
    %v870 = vpack.c.b16 %v838, %v838
    %v871 = vpack.c.b16 %v839, %v839
    %v872 = vpack.c.b16 %v840, %v840
    %v873 = vpack.c.b16 %v841, %v841
    %v874 = vpack.c.b16 %v842, %v842
    %v875 = vpack.c.b16 %v843, %v843
    %v876 = vpack.c.b16 %v844, %v844
    %v877 = vpack.c.b16 %v845, %v845
    %v878 = vpack.c.b16 %v846, %v846
    %v879 = vpack.c.b16 %v847, %v847
    %v880 = vpack.c.b16 %v848, %v848
    %v881 = vpack.c.b16 %v849, %v849
    %v882 = vpack.c.b16 %v850, %v850
    %v883 = vpack.c.b16 %v851, %v851
    %v884 = vpack.c.b16 %v852, %v852
    %v885 = vpack.c.b16 %v853, %v853
    %v886 = vpack.c.b16 %v854, %v854
    %v887 = vpack.c.b16 %v855, %v855
    %v888 = vpack.c.b16 %v856, %v856
    %v889 = vpack.c.b16 %v857, %v857
    %v890 = vpack.c.b16 %v858, %v858
    %v891 = vpack.c.b16 %v859, %v859
    %v892 = vpack.c.b16 %v860, %v860
    %v893 = vpack.c.b16 %v861, %v861
    %v894 = vpack.c.b16 %v862, %v862
    %v895 = vpack.c.b16 %v863, %v863
    %v896 = vpack.c.b16 %v864, %v864
    %v897 = vpack.c.b16 %v865, %v865
    %v898 = vpack.c.b16 %v866, %v866
    %v899 = vpack.c.b16 %v867, %v867
    %932 = vst [vmem:[#allocation8] sm:$0xf] %v868
    %933 = vst [vmem:[#allocation8 + $0x4] sm:$0xf] %v869
    %934 = vst [vmem:[#allocation8 + $0x8] sm:$0xf] %v870
    %935 = vst [vmem:[#allocation8 + $0xc] sm:$0xf] %v871
    %936 = vst [vmem:[#allocation8 + $0x10] sm:$0xf] %v872
    %937 = vst [vmem:[#allocation8 + $0x14] sm:$0xf] %v873
    %938 = vst [vmem:[#allocation8 + $0x18] sm:$0xf] %v874
    %939 = vst [vmem:[#allocation8 + $0x1c] sm:$0xf] %v875
    %940 = vst [vmem:[#allocation8 + $0x20] sm:$0xf] %v876
    %941 = vst [vmem:[#allocation8 + $0x24] sm:$0xf] %v877
    %942 = vst [vmem:[#allocation8 + $0x28] sm:$0xf] %v878
    %943 = vst [vmem:[#allocation8 + $0x2c] sm:$0xf] %v879
    %944 = vst [vmem:[#allocation8 + $0x30] sm:$0xf] %v880
    %945 = vst [vmem:[#allocation8 + $0x34] sm:$0xf] %v881
    %946 = vst [vmem:[#allocation8 + $0x38] sm:$0xf] %v882
    %947 = vst [vmem:[#allocation8 + $0x3c] sm:$0xf] %v883
    %948 = vst [vmem:[#allocation8 + $0x40] sm:$0xf] %v884
    %949 = vst [vmem:[#allocation8 + $0x44] sm:$0xf] %v885
    %950 = vst [vmem:[#allocation8 + $0x48] sm:$0xf] %v886
    %951 = vst [vmem:[#allocation8 + $0x4c] sm:$0xf] %v887
    %952 = vst [vmem:[#allocation8 + $0x50] sm:$0xf] %v888
    %953 = vst [vmem:[#allocation8 + $0x54] sm:$0xf] %v889
    %954 = vst [vmem:[#allocation8 + $0x58] sm:$0xf] %v890
    %955 = vst [vmem:[#allocation8 + $0x5c] sm:$0xf] %v891
    %956 = vst [vmem:[#allocation8 + $0x60] sm:$0xf] %v892
    %957 = vst [vmem:[#allocation8 + $0x64] sm:$0xf] %v893
    %958 = vst [vmem:[#allocation8 + $0x68] sm:$0xf] %v894
    %959 = vst [vmem:[#allocation8 + $0x6c] sm:$0xf] %v895
    %960 = vst [vmem:[#allocation8 + $0x70] sm:$0xf] %v896
    %961 = vst [vmem:[#allocation8 + $0x74] sm:$0xf] %v897
    %962 = vst [vmem:[#allocation8 + $0x78] sm:$0xf] %v898
    %963 = vst [vmem:[#allocation8 + $0x7c] sm:$0xf] %v899
    // Predicated region
    $region34: #{tpu_custom_call.1} parent=1 // pred_check
      _
    $region35: #{tpu_custom_call.1} parent=1 // pred_check_branch
      %965 = sbr.rel (0) target = $region37
    $region36: #{tpu_custom_call.1} parent=1 // pred_region
      %s967 = ssub.s32 2048, 2048
      %968 = vsyncadd [#allocation4], %s967
      %s969 = sshll.u32 [#allocation8], 4
      %s970 = int_to_ptr.vmem [resolvable:$true] %s969
      %975 = dma.vmem_to_hbm [thread:$0]  %s970, 2048, %s5, [#allocation4], 64, 64, 4
    $region37: #{tpu_custom_call.1} parent=1 // pred_fallthru
      _
    // Predicated region
    $region38: #{tpu_custom_call.1} parent=1 // pred_check
      _
    $region39: #{tpu_custom_call.1} parent=1 // pred_check_branch
      %977 = sbr.rel (0) target = $region41
    $region40: #{tpu_custom_call.1} parent=1 // pred_region
      %978 = dma.done [#allocation4], 2048
    $region41: #{tpu_custom_call.1} parent=1 // pred_fallthru
      _
    %979 = vsyncpa [#allocation3], 1
    %980 = vsyncpa [#allocation6], 1
    %981 = vsyncpa [#allocation4], 1

</llo_original>
